<compile_context>
chip_gen: v7x
topology: tpu7x:2x2x1
jax: 0.10.0
libtpu: 0.0.40
codegen_flags: <defaults>
</compile_context>

<pallas_src>
import functools

import jax
import jax.numpy as jnp
from jax.experimental import pallas as pl
from jax.experimental.pallas import tpu as pltpu

ACTION_DIM = 1
ABSTRACT_STATE_DIM = 8
HIDDEN_DIM = 32
REWARD_DIM = 1
HEAD_DIM = ABSTRACT_STATE_DIM + REWARD_DIM      # fused state+reward head width

_TB_TARGET = 1024   # batch tile target; sweep 1024-8192 on real workloads


def _round_up(x, m):
    return (x + m - 1) // m * m


def dynamics_kernel(state_ref, act_ref,
                    w1s_ref, w1a_ref, b1_ref,
                    w2_ref, b2_ref,
                    wh_ref, bh_ref,
                    out_ref):
    """One (TB, ·) batch tile: two hidden Linear+ReLU, fused state/reward head.

    Matmuls run on the MXU in the weights' dtype (f32 or bf16) with f32
    accumulation; bias adds, ReLU and tanh stay in f32.
    """
    s = state_ref[...]                                   # (TB, S) matmul dtype
    a = act_ref[...].astype(jnp.float32)                 # (TB, A=1)

    # fc layer 1: [state | action] @ w1 + b1 with the concat eliminated:
    #   state @ w1_state  (MXU)  +  action ⊗ w1_action_row  (VPU broadcast MAC)
    h = jnp.dot(s, w1s_ref[...], preferred_element_type=jnp.float32)
    h = h + a * w1a_ref[...].astype(jnp.float32) + b1_ref[...]
    h = jnp.maximum(h, 0.0)

    # fc layer 2: Linear + ReLU
    h = jnp.dot(h.astype(w2_ref.dtype), w2_ref[...],
                preferred_element_type=jnp.float32) + b2_ref[...]
    h = jnp.maximum(h, 0.0)

    # fused heads: one (TB,H)@(H, S+R) matmul; tanh on the state columns,
    # identity ('linear') on the reward column.
    y = jnp.dot(h.astype(wh_ref.dtype), wh_ref[...],
                preferred_element_type=jnp.float32) + bh_ref[...]
    col = jax.lax.broadcasted_iota(jnp.int32, y.shape, 1)
    out_ref[...] = jnp.where(col < ABSTRACT_STATE_DIM, jnp.tanh(y), y)


def init_params(key):
    """Deterministic, PyTorch-Linear-like (uniform fan-in) init.

    Weights stored as (in_dim, out_dim); biases as (1, out_dim); all f32."""
    in_dim = ABSTRACT_STATE_DIM + ACTION_DIM
    dims = [(in_dim, HIDDEN_DIM),
            (HIDDEN_DIM, HIDDEN_DIM),
            (HIDDEN_DIM, ABSTRACT_STATE_DIM),
            (HIDDEN_DIM, REWARD_DIM)]
    params = []
    for (di, do) in dims:
        key, kw, kb = jax.random.split(key, 3)
        bound = 1.0 / jnp.sqrt(jnp.float32(di))
        w = jax.random.uniform(kw, (di, do), jnp.float32, -bound, bound)
        b = jax.random.uniform(kb, (1, do), jnp.float32, -bound, bound)
        params += [w, b]
    return params   # [w1,b1,w2,b2,ws,bs,wr,br]


def prepare_params(params, matmul_dtype=jnp.float32):
    """One-time (amortized) wrapper-side prep: split w1 into state/action
    parts, fuse the two output heads into one matmul, cast MXU operands."""
    w1, b1, w2, b2, ws, bs, wr, br = params
    w1s = w1[:ABSTRACT_STATE_DIM].astype(matmul_dtype)          # (S, H)
    w1a = w1[ABSTRACT_STATE_DIM:].astype(matmul_dtype)          # (A, H)
    wh = jnp.concatenate([ws, wr], axis=-1).astype(matmul_dtype)  # (H, S+R)
    bh = jnp.concatenate([bs, br], axis=-1).astype(jnp.float32)   # (1, S+R)
    return (w1s, w1a, b1.astype(jnp.float32),
            w2.astype(matmul_dtype), b2.astype(jnp.float32),
            wh, bh)


@functools.partial(jax.jit, static_argnames=("matmul_dtype",))
def _dynamics_forward_impl(abstract_state, action, prepared, matmul_dtype):
    w1s, w1a, b1, w2, b2, wh, bh = prepared
    B = abstract_state.shape[0]

    s = abstract_state.astype(matmul_dtype)                              # (B, S)
    a = jnp.asarray(action, jnp.float32)[:, None].astype(matmul_dtype)   # (B, 1)

    # Batch tile (sublane-aligned); pad the batch so B % TB == 0.
    TB = min(_TB_TARGET, _round_up(B, 8))
    Bp = _round_up(B, TB)
    if Bp != B:
        s = jnp.pad(s, ((0, Bp - B), (0, 0)))
        a = jnp.pad(a, ((0, Bp - B), (0, 0)))

    grid = (Bp // TB,)
    batch_spec = lambda feat: pl.BlockSpec((TB, feat), lambda i: (i, 0))
    const_spec = lambda arr: pl.BlockSpec(arr.shape, lambda i: (0, 0))

    # TODO(synk): a batch-on-lanes (features, B) layout would make every
    # VPU/EUP op and the output store lane-dense, but the module's interface
    # is (B, features) so it would cost an explicit transpose per call.
    out = pl.pallas_call(
        dynamics_kernel,
        out_shape=jax.ShapeDtypeStruct((Bp, HEAD_DIM), jnp.float32),
        grid=grid,
        in_specs=[batch_spec(ABSTRACT_STATE_DIM),
                  batch_spec(ACTION_DIM),
                  const_spec(w1s), const_spec(w1a), const_spec(b1),
                  const_spec(w2), const_spec(b2),
                  const_spec(wh), const_spec(bh)],
        out_specs=batch_spec(HEAD_DIM),
        compiler_params=pltpu.CompilerParams(
            dimension_semantics=("parallel",)),
    )(s, a, w1s, w1a, b1, w2, b2, wh, bh)

    next_state = out[:B, :ABSTRACT_STATE_DIM]
    reward = out[:B, ABSTRACT_STATE_DIM:]
    return next_state, reward


def dynamics_forward(abstract_state, action, prepared_params,
                     matmul_dtype=jnp.float32):
    """abstract_state: (B, abstract_state_dim); action: (B,) any numeric."""
    next_state, reward = _dynamics_forward_impl(
        abstract_state, action, prepared_params, matmul_dtype=matmul_dtype)
    # The 'playing' status string cannot cross the jit boundary; attach here.
    return next_state, reward, 'playing'


def reference_forward(abstract_state, action, params, matmul_dtype=jnp.float32):
    """Pure-JAX reference of the same math (mirrors the kernel's precision)."""
    w1, b1, w2, b2, ws, bs, wr, br = params
    md = matmul_dtype
    s = abstract_state.astype(md)
    a = jnp.asarray(action, jnp.float32)[:, None].astype(md)
    w1s, w1a = w1[:ABSTRACT_STATE_DIM], w1[ABSTRACT_STATE_DIM:]
    h = jnp.dot(s, w1s.astype(md), preferred_element_type=jnp.float32)
    h = h + a.astype(jnp.float32) * w1a.astype(md).astype(jnp.float32) + b1
    h = jnp.maximum(h, 0.0)
    h = jnp.dot(h.astype(md), w2.astype(md),
                preferred_element_type=jnp.float32) + b2
    h = jnp.maximum(h, 0.0)
    state = jnp.tanh(jnp.dot(h.astype(md), ws.astype(md),
                             preferred_element_type=jnp.float32) + bs)
    reward = jnp.dot(h.astype(md), wr.astype(md),
                     preferred_element_type=jnp.float32) + br
    return state, reward


if __name__ == "__main__":
    key = jax.random.PRNGKey(0)
    kp, ks, ka = jax.random.split(key, 3)

    params = init_params(kp)
    batch = 2
    abstract_state = jax.random.normal(ks, (batch, ABSTRACT_STATE_DIM), jnp.float32)
    action = jax.random.randint(ka, (batch,), 0, 4).astype(jnp.float32)

    # f32 MXU operands (default; safe on every TPU generation).
    prepared_f32 = prepare_params(params, jnp.float32)
    next_state, reward, status = dynamics_forward(
        abstract_state, action, prepared_f32, matmul_dtype=jnp.float32)
    next_state = jax.block_until_ready(next_state)
    reward = jax.block_until_ready(reward)

    ref_state, ref_reward = reference_forward(abstract_state, action, params,
                                              jnp.float32)
    assert next_state.shape == (batch, ABSTRACT_STATE_DIM)
    assert reward.shape == (batch, REWARD_DIM)
    assert status == 'playing'
    assert jnp.allclose(next_state, ref_state, atol=1e-4)
    assert jnp.allclose(reward, ref_reward, atol=1e-4)

    # bf16 MXU operands (v6e/v7x recommendation): halves activation DMA bytes,
    # keeps f32 accumulation and f32 bias/ReLU/tanh.
    prepared_bf16 = prepare_params(params, jnp.bfloat16)
    ns16, r16, _ = dynamics_forward(abstract_state, action, prepared_bf16,
                                    matmul_dtype=jnp.bfloat16)
    ns16 = jax.block_until_ready(ns16)
    r16 = jax.block_until_ready(r16)
    ref_s16, ref_r16 = reference_forward(abstract_state, action, params,
                                         jnp.bfloat16)
    assert jnp.allclose(ns16, ref_s16, atol=2e-2)
    assert jnp.allclose(r16, ref_r16, atol=2e-2)

    print("KERNEL_OK")
</pallas_src>

<mosaic_0001>
module attributes {stable_mosaic.version = 11 : i64} {
  func.func @dynamics_kernel(%arg0: i32, %arg1: memref<8x8xf32, #tpu.memory_space<vmem>>, %arg2: memref<8x1xf32, #tpu.memory_space<vmem>>, %arg3: memref<8x32xf32, #tpu.memory_space<vmem>>, %arg4: memref<1x32xf32, #tpu.memory_space<vmem>>, %arg5: memref<1x32xf32, #tpu.memory_space<vmem>>, %arg6: memref<32x32xf32, #tpu.memory_space<vmem>>, %arg7: memref<1x32xf32, #tpu.memory_space<vmem>>, %arg8: memref<32x9xf32, #tpu.memory_space<vmem>>, %arg9: memref<1x9xf32, #tpu.memory_space<vmem>>, %arg10: memref<8x9xf32, #tpu.memory_space<vmem>>) attributes {dimension_semantics = [#tpu.dimension_semantics<parallel>], iteration_bounds = array<i64: 1>, scalar_prefetch = 0 : i64, scratch_operands = 0 : i64, tpu.core_type = #tpu.core_type<tc>, window_params = [{transform_indices = @transform_0, window_bounds = array<i64: 8, 8>}, {transform_indices = @transform_1, window_bounds = array<i64: 8, 1>}, {pipeline_mode = #tpu.pipeline_mode<synchronous>, transform_indices = @transform_2, window_bounds = array<i64: 8, 32>}, {pipeline_mode = #tpu.pipeline_mode<synchronous>, transform_indices = @transform_3, window_bounds = array<i64: 1, 32>}, {pipeline_mode = #tpu.pipeline_mode<synchronous>, transform_indices = @transform_4, window_bounds = array<i64: 1, 32>}, {pipeline_mode = #tpu.pipeline_mode<synchronous>, transform_indices = @transform_5, window_bounds = array<i64: 32, 32>}, {pipeline_mode = #tpu.pipeline_mode<synchronous>, transform_indices = @transform_6, window_bounds = array<i64: 1, 32>}, {pipeline_mode = #tpu.pipeline_mode<synchronous>, transform_indices = @transform_7, window_bounds = array<i64: 32, 9>}, {pipeline_mode = #tpu.pipeline_mode<synchronous>, transform_indices = @transform_8, window_bounds = array<i64: 1, 9>}, {transform_indices = @transform_9, window_bounds = array<i64: 8, 9>}]} {
    %c0 = arith.constant 0 : index
    %c0_0 = arith.constant 0 : index
    %0 = vector.load %arg1[%c0, %c0_0] : memref<8x8xf32, #tpu.memory_space<vmem>>, vector<8x8xf32>
    %c0_1 = arith.constant 0 : index
    %c0_2 = arith.constant 0 : index
    %1 = vector.load %arg2[%c0_1, %c0_2] : memref<8x1xf32, #tpu.memory_space<vmem>>, vector<8x1xf32>
    %c0_3 = arith.constant 0 : index
    %c0_4 = arith.constant 0 : index
    %2 = vector.load %arg3[%c0_3, %c0_4] : memref<8x32xf32, #tpu.memory_space<vmem>>, vector<8x32xf32>
    %cst = arith.constant dense<0.000000e+00> : vector<8x32xf32>
    %3 = tpu.matmul %0, %2, %cst {dimension_numbers = #tpu.dot_dimension_numbers<[1], [0], [0], [1], [0, 0, 1, 1], [], []>} : vector<8x8xf32>, vector<8x32xf32>, vector<8x32xf32> -> vector<8x32xf32>
    %c0_5 = arith.constant 0 : index
    %c0_6 = arith.constant 0 : index
    %4 = vector.load %arg4[%c0_5, %c0_6] : memref<1x32xf32, #tpu.memory_space<vmem>>, vector<1x32xf32>
    %5 = vector.broadcast %1 : vector<8x1xf32> to vector<8x32xf32>
    %6 = vector.broadcast %4 : vector<1x32xf32> to vector<8x32xf32>
    %7 = arith.mulf %5, %6 : vector<8x32xf32>
    %8 = arith.addf %3, %7 : vector<8x32xf32>
    %c0_7 = arith.constant 0 : index
    %c0_8 = arith.constant 0 : index
    %9 = vector.load %arg5[%c0_7, %c0_8] : memref<1x32xf32, #tpu.memory_space<vmem>>, vector<1x32xf32>
    %10 = vector.broadcast %9 : vector<1x32xf32> to vector<8x32xf32>
    %11 = arith.addf %8, %10 : vector<8x32xf32>
    %cst_9 = arith.constant 0.000000e+00 : f32
    %12 = vector.broadcast %cst_9 : f32 to vector<8x32xf32>
    %13 = arith.maximumf %11, %12 : vector<8x32xf32>
    %c0_10 = arith.constant 0 : index
    %c0_11 = arith.constant 0 : index
    %14 = vector.load %arg6[%c0_10, %c0_11] : memref<32x32xf32, #tpu.memory_space<vmem>>, vector<32x32xf32>
    %cst_12 = arith.constant dense<0.000000e+00> : vector<8x32xf32>
    %15 = tpu.matmul %13, %14, %cst_12 {dimension_numbers = #tpu.dot_dimension_numbers<[1], [0], [0], [1], [0, 0, 1, 1], [], []>} : vector<8x32xf32>, vector<32x32xf32>, vector<8x32xf32> -> vector<8x32xf32>
    %c0_13 = arith.constant 0 : index
    %c0_14 = arith.constant 0 : index
    %16 = vector.load %arg7[%c0_13, %c0_14] : memref<1x32xf32, #tpu.memory_space<vmem>>, vector<1x32xf32>
    %17 = vector.broadcast %16 : vector<1x32xf32> to vector<8x32xf32>
    %18 = arith.addf %15, %17 : vector<8x32xf32>
    %cst_15 = arith.constant 0.000000e+00 : f32
    %19 = vector.broadcast %cst_15 : f32 to vector<8x32xf32>
    %20 = arith.maximumf %18, %19 : vector<8x32xf32>
    %c0_16 = arith.constant 0 : index
    %c0_17 = arith.constant 0 : index
    %21 = vector.load %arg8[%c0_16, %c0_17] : memref<32x9xf32, #tpu.memory_space<vmem>>, vector<32x9xf32>
    %cst_18 = arith.constant dense<0.000000e+00> : vector<8x9xf32>
    %22 = tpu.matmul %20, %21, %cst_18 {dimension_numbers = #tpu.dot_dimension_numbers<[1], [0], [0], [1], [0, 0, 1, 1], [], []>} : vector<8x32xf32>, vector<32x9xf32>, vector<8x9xf32> -> vector<8x9xf32>
    %c0_19 = arith.constant 0 : index
    %c0_20 = arith.constant 0 : index
    %23 = vector.load %arg9[%c0_19, %c0_20] : memref<1x9xf32, #tpu.memory_space<vmem>>, vector<1x9xf32>
    %24 = vector.broadcast %23 : vector<1x9xf32> to vector<8x9xf32>
    %25 = arith.addf %22, %24 : vector<8x9xf32>
    %26 = tpu.iota {dimensions = array<i32: 1>} : vector<8x9xi32>
    %c8_i32 = arith.constant 8 : i32
    %27 = vector.broadcast %c8_i32 : i32 to vector<8x9xi32>
    %28 = arith.cmpi slt, %26, %27 : vector<8x9xi32>
    %29 = math.tanh %25 : vector<8x9xf32>
    %30 = arith.select %28, %29, %25 : vector<8x9xi1>, vector<8x9xf32>
    %c0_21 = arith.constant 0 : index
    %c0_22 = arith.constant 0 : index
    %31 = vector.load %arg10[%c0_21, %c0_22] : memref<8x9xf32, #tpu.memory_space<vmem>>, vector<8x9xf32>
    tpu.vector_store %arg10[%c0_21, %c0_22], %30 {strides = array<i32>} : memref<8x9xf32, #tpu.memory_space<vmem>>, vector<8x9xf32>,
    return
  }
  func.func @transform_0(%arg0: i32) -> (i32, i32) {
    %c0_i32 = arith.constant 0 : i32
    %c0_i32_0 = arith.constant 0 : i32
    return %arg0, %c0_i32 : i32, i32
  }
  func.func @transform_1(%arg0: i32) -> (i32, i32) {
    %c0_i32 = arith.constant 0 : i32
    %c0_i32_0 = arith.constant 0 : i32
    return %arg0, %c0_i32 : i32, i32
  }
  func.func @transform_2(%arg0: i32) -> (i32, i32) {
    %c0_i32 = arith.constant 0 : i32
    %c0_i32_0 = arith.constant 0 : i32
    %c0_i32_1 = arith.constant 0 : i32
    return %c0_i32, %c0_i32_0 : i32, i32
  }
  func.func @transform_3(%arg0: i32) -> (i32, i32) {
    %c0_i32 = arith.constant 0 : i32
    %c0_i32_0 = arith.constant 0 : i32
    %c0_i32_1 = arith.constant 0 : i32
    return %c0_i32, %c0_i32_0 : i32, i32
  }
  func.func @transform_4(%arg0: i32) -> (i32, i32) {
    %c0_i32 = arith.constant 0 : i32
    %c0_i32_0 = arith.constant 0 : i32
    %c0_i32_1 = arith.constant 0 : i32
    return %c0_i32, %c0_i32_0 : i32, i32
  }
  func.func @transform_5(%arg0: i32) -> (i32, i32) {
    %c0_i32 = arith.constant 0 : i32
    %c0_i32_0 = arith.constant 0 : i32
    %c0_i32_1 = arith.constant 0 : i32
    return %c0_i32, %c0_i32_0 : i32, i32
  }
  func.func @transform_6(%arg0: i32) -> (i32, i32) {
    %c0_i32 = arith.constant 0 : i32
    %c0_i32_0 = arith.constant 0 : i32
    %c0_i32_1 = arith.constant 0 : i32
    return %c0_i32, %c0_i32_0 : i32, i32
  }
  func.func @transform_7(%arg0: i32) -> (i32, i32) {
    %c0_i32 = arith.constant 0 : i32
    %c0_i32_0 = arith.constant 0 : i32
    %c0_i32_1 = arith.constant 0 : i32
    return %c0_i32, %c0_i32_0 : i32, i32
  }
  func.func @transform_8(%arg0: i32) -> (i32, i32) {
    %c0_i32 = arith.constant 0 : i32
    %c0_i32_0 = arith.constant 0 : i32
    %c0_i32_1 = arith.constant 0 : i32
    return %c0_i32, %c0_i32_0 : i32, i32
  }
  func.func @transform_9(%arg0: i32) -> (i32, i32) {
    %c0_i32 = arith.constant 0 : i32
    %c0_i32_0 = arith.constant 0 : i32
    return %arg0, %c0_i32 : i32, i32
  }
}

</mosaic_0001>

<llo_original>
// kernel: _dynamics_forward_impl.1
$region0: #{_dynamics_forward_impl.1}
  #allocation0 [shape = 'u32[]', space=smem, size = 0x4, offset = 0x4, fixed_abs, tag = 'smem constant byte address 0x4 - core index']
  #allocation1 [shape = 'u32[144,128]{1,0:T(1,128)}', space=vmem, size = 0x12000, scoped, tag = 'internal scratch']
  %s0 = inlined_call_operand.vmem [shape: f32[8,8], index: 0, kind: input, shape index: {}]
  %s1 = inlined_call_operand.vmem [shape: f32[8,1], index: 1, kind: input, shape index: {}]
  %s2 = inlined_call_operand.vmem [shape: f32[8,32], index: 2, kind: input, shape index: {}]
  %s3 = inlined_call_operand.vmem [shape: f32[1,32], index: 3, kind: input, shape index: {}]
  %s4 = inlined_call_operand.vmem [shape: f32[1,32], index: 4, kind: input, shape index: {}]
  %s5 = inlined_call_operand.vmem [shape: f32[32,32], index: 5, kind: input, shape index: {}]
  %s6 = inlined_call_operand.vmem [shape: f32[1,32], index: 6, kind: input, shape index: {}]
  %s7 = inlined_call_operand.vmem [shape: f32[32,9], index: 7, kind: input, shape index: {}]
  %s8 = inlined_call_operand.vmem [shape: f32[1,9], index: 8, kind: input, shape index: {}]
  %s9 = inlined_call_operand.vmem [shape: f32[8,9], index: 9, kind: output, shape index: {}]
  %s10 = sld [smem:[#allocation0]]
  $region46: #{_dynamics_forward_impl.1} parent=0
    _
  %s12 = ssub.s32 1, %s10
  %s13 = scalar_select 0, %s12, %s10
  // Predicated region
  $region2: #{_dynamics_forward_impl.1} parent=0 // pred_check
    _
  $region3: #{_dynamics_forward_impl.1} parent=0 // pred_check_branch
    %15 = sbr.rel (0) target = $region5
  $region4: #{_dynamics_forward_impl.1} parent=0 // pred_region
    _
  $region5: #{_dynamics_forward_impl.1} parent=0 // pred_fallthru
    _
  // Predicated region
  $region6: #{_dynamics_forward_impl.1} parent=0 // pred_check
    _
  $region7: #{_dynamics_forward_impl.1} parent=0 // pred_check_branch
    %17 = sbr.rel (0) target = $region9
  $region8: #{_dynamics_forward_impl.1} parent=0 // pred_region
    _
  $region9: #{_dynamics_forward_impl.1} parent=0 // pred_fallthru
    _
  // Predicated region
  $region10: #{_dynamics_forward_impl.1} parent=0 // pred_check
    _
  $region11: #{_dynamics_forward_impl.1} parent=0 // pred_check_branch
    %19 = sbr.rel (0) target = $region13
  $region12: #{_dynamics_forward_impl.1} parent=0 // pred_region
    _
  $region13: #{_dynamics_forward_impl.1} parent=0 // pred_fallthru
    _
  // Predicated region
  $region14: #{_dynamics_forward_impl.1} parent=0 // pred_check
    _
  $region15: #{_dynamics_forward_impl.1} parent=0 // pred_check_branch
    %21 = sbr.rel (0) target = $region17
  $region16: #{_dynamics_forward_impl.1} parent=0 // pred_region
    _
  $region17: #{_dynamics_forward_impl.1} parent=0 // pred_fallthru
    _
  // Predicated region
  $region18: #{_dynamics_forward_impl.1} parent=0 // pred_check
    _
  $region19: #{_dynamics_forward_impl.1} parent=0 // pred_check_branch
    %23 = sbr.rel (0) target = $region21
  $region20: #{_dynamics_forward_impl.1} parent=0 // pred_region
    _
  $region21: #{_dynamics_forward_impl.1} parent=0 // pred_fallthru
    _
  // Predicated region
  $region22: #{_dynamics_forward_impl.1} parent=0 // pred_check
    _
  $region23: #{_dynamics_forward_impl.1} parent=0 // pred_check_branch
    %25 = sbr.rel (0) target = $region25
  $region24: #{_dynamics_forward_impl.1} parent=0 // pred_region
    _
  $region25: #{_dynamics_forward_impl.1} parent=0 // pred_fallthru
    _
  // Predicated region
  $region26: #{_dynamics_forward_impl.1} parent=0 // pred_check
    _
  $region27: #{_dynamics_forward_impl.1} parent=0 // pred_check_branch
    %27 = sbr.rel (0) target = $region29
  $region28: #{_dynamics_forward_impl.1} parent=0 // pred_region
    _
  $region29: #{_dynamics_forward_impl.1} parent=0 // pred_fallthru
    _
  // Predicated region
  $region30: #{_dynamics_forward_impl.1} parent=0 // pred_check
    _
  $region31: #{_dynamics_forward_impl.1} parent=0 // pred_check_branch
    %29 = sbr.rel (0) target = $region33
  $region32: #{_dynamics_forward_impl.1} parent=0 // pred_region
    _
  $region33: #{_dynamics_forward_impl.1} parent=0 // pred_fallthru
    _
  // Predicated region
  $region34: #{_dynamics_forward_impl.1} parent=0 // pred_check
    _
  $region35: #{_dynamics_forward_impl.1} parent=0 // pred_check_branch
    %31 = sbr.rel (0) target = $region37
  $region36: #{_dynamics_forward_impl.1} parent=0 // pred_region
    _
  $region37: #{_dynamics_forward_impl.1} parent=0 // pred_fallthru
    _
  %v32 = vld [vmem:[%s0] sm:$0xff]
  %v33 = vld [vmem:[%s1] sm:$0xff]
  %v34 = vld [vmem:[%s2] sm:$0xff]
  %v35 = vld [vmem:[%s3] sm:$0x1]
  %37 = vset.pattern.permute.xlu0 0
  %38 = vperm.xlu0 %37, %v33
  %v39 = vpop.permute.xlu0 %38
  %v42 = vlaneseq
  %v43 = vshrl.u32 %v42, 7
  %v44 = vsub.s32 0, %v43
  %v45 = vrot.slane %v35, %v44
  %v47 = vmul.f32 %v39, %v45
  %vm48 = vcmask 64512
  %v50 = vsel %vm48, %v32, 0
  %52 = vmatprep.subr.mxu0 0.0
  %53 = vmatpush1.msra.mxu0 %v34
  %54 = vmatprep.subr.mxu0 0.0
  %55 = vmatpush1.msra.mxu0 0.0
  %56 = vmatprep.subr.mxu0 0.0
  %57 = vmatpush1.msra.mxu0 0.0
  %58 = vmatprep.subr.mxu0 0.0
  %59 = vmatpush1.msra.mxu0 0.0
  %60 = vmatprep.subr.mxu0 0.0
  %61 = vmatpush1.msra.mxu0 0.0
  %62 = vmatprep.subr.mxu0 0.0
  %63 = vmatpush1.msra.mxu0 0.0
  %64 = vmatprep.subr.mxu0 0.0
  %65 = vmatpush1.msra.mxu0 0.0
  %66 = vmatprep.subr.mxu0 0.0
  %67 = vmatpush1.msra.mxu0 0.0
  %68 = vmatprep.subr.mxu0 0.0
  %69 = vmatpush1.msra.mxu0 0.0
  %70 = vmatprep.subr.mxu0 0.0
  %71 = vmatpush1.msra.mxu0 0.0
  %72 = vmatprep.subr.mxu0 0.0
  %73 = vmatpush1.msra.mxu0 0.0
  %74 = vmatprep.subr.mxu0 0.0
  %75 = vmatpush1.msra.mxu0 0.0
  %76 = vmatprep.subr.mxu0 0.0
  %77 = vmatpush1.msra.mxu0 0.0
  %78 = vmatprep.subr.mxu0 0.0
  %79 = vmatpush1.msra.mxu0 0.0
  %80 = vmatprep.subr.mxu0 0.0
  %81 = vmatpush1.msra.mxu0 0.0
  %82 = vmatprep.subr.mxu0 0.0
  %83 = vmatpush1.msra.mxu0 0.0
  %84 = vmatprep.subr.mxu0 0.0
  %85 = vmatpush1.msra.mxu0 0.0
  %86 = vmatprep.subr.mxu0 0.0
  %87 = vmatpush1.msra.mxu0 0.0
  %88 = vmatprep.subr.mxu0 0.0
  %89 = vmatpush1.msra.mxu0 0.0
  %90 = vmatprep.subr.mxu0 0.0
  %91 = vmatpush1.msra.mxu0 0.0
  %92 = vmatprep.subr.mxu0 0.0
  %93 = vmatpush1.msra.mxu0 0.0
  %94 = vmatprep.subr.mxu0 0.0
  %95 = vmatpush1.msra.mxu0 0.0
  %96 = vmatprep.subr.mxu0 0.0
  %97 = vmatpush1.msra.mxu0 0.0
  %98 = vmatprep.subr.mxu0 0.0
  %99 = vmatpush1.msra.mxu0 0.0
  %100 = vmatprep.subr.mxu0 0.0
  %101 = vmatpush1.msra.mxu0 0.0
  %102 = vmatprep.subr.mxu0 0.0
  %103 = vmatpush1.msra.mxu0 0.0
  %104 = vmatprep.subr.mxu0 0.0
  %105 = vmatpush1.msra.mxu0 0.0
  %106 = vmatprep.subr.mxu0 0.0
  %107 = vmatpush1.msra.mxu0 0.0
  %108 = vmatprep.subr.mxu0 0.0
  %109 = vmatpush1.msra.mxu0 0.0
  %110 = vmatprep.subr.mxu0 0.0
  %111 = vmatpush1.msra.mxu0 0.0
  %112 = vmatprep.subr.mxu0 0.0
  %113 = vmatpush1.msra.mxu0 0.0
  %114 = vmatprep.subr.mxu0 0.0
  %115 = vmatpush1.msra.mxu0 0.0
  %116 = vmatprep.mubr.f32.mxu0 0.0
  %117 = vmatmul.mubr.f32.gmra.mrb[0].mxu0 %v50
  %v118 = vpop.f32.mrb[0].mxu0
  %v119 = vadd.f32 %v47, %v118
  %v120 = vpop.f32.mrb[0].mxu0
  %121 = vdwg.mxu0
  %v122 = vld [vmem:[%s4] sm:$0x1]
  %v124 = vlaneseq
  %v125 = vshrl.u32 %v124, 7
  %v126 = vsub.s32 0, %v125
  %v127 = vrot.slane %v122, %v126
  %v129 = vadd.f32 %v119, %v127
  %v130 = vmax.f32 %v129, 0.0
  %v131 = vld [vmem:[%s5] sm:$0xff]
  %v132 = vld [vmem:[%s5 + $0x8] sm:$0xff]
  %v133 = vld [vmem:[%s5 + $0x10] sm:$0xff]
  %v134 = vld [vmem:[%s5 + $0x18] sm:$0xff]
  %v135 = vld [vmem:[%s6] sm:$0x1]
  %v137 = vlaneseq
  %v138 = vshrl.u32 %v137, 7
  %v139 = vsub.s32 0, %v138
  %v140 = vrot.slane %v135, %v139
  %vm142 = vcmask 261120
  %v144 = vsel %vm142, %v130, 0
  %146 = vmatprep.subr.mxu0 0.0
  %147 = vmatpush1.msra.mxu0 %v131
  %148 = vmatprep.subr.mxu0 0.0
  %149 = vmatpush1.msra.mxu0 %v132
  %150 = vmatprep.subr.mxu0 0.0
  %151 = vmatpush1.msra.mxu0 %v133
  %152 = vmatprep.subr.mxu0 0.0
  %153 = vmatpush1.msra.mxu0 %v134
  %154 = vmatprep.subr.mxu0 0.0
  %155 = vmatpush1.msra.mxu0 0.0
  %156 = vmatprep.subr.mxu0 0.0
  %157 = vmatpush1.msra.mxu0 0.0
  %158 = vmatprep.subr.mxu0 0.0
  %159 = vmatpush1.msra.mxu0 0.0
  %160 = vmatprep.subr.mxu0 0.0
  %161 = vmatpush1.msra.mxu0 0.0
  %162 = vmatprep.subr.mxu0 0.0
  %163 = vmatpush1.msra.mxu0 0.0
  %164 = vmatprep.subr.mxu0 0.0
  %165 = vmatpush1.msra.mxu0 0.0
  %166 = vmatprep.subr.mxu0 0.0
  %167 = vmatpush1.msra.mxu0 0.0
  %168 = vmatprep.subr.mxu0 0.0
  %169 = vmatpush1.msra.mxu0 0.0
  %170 = vmatprep.subr.mxu0 0.0
  %171 = vmatpush1.msra.mxu0 0.0
  %172 = vmatprep.subr.mxu0 0.0
  %173 = vmatpush1.msra.mxu0 0.0
  %174 = vmatprep.subr.mxu0 0.0
  %175 = vmatpush1.msra.mxu0 0.0
  %176 = vmatprep.subr.mxu0 0.0
  %177 = vmatpush1.msra.mxu0 0.0
  %178 = vmatprep.subr.mxu0 0.0
  %179 = vmatpush1.msra.mxu0 0.0
  %180 = vmatprep.subr.mxu0 0.0
  %181 = vmatpush1.msra.mxu0 0.0
  %182 = vmatprep.subr.mxu0 0.0
  %183 = vmatpush1.msra.mxu0 0.0
  %184 = vmatprep.subr.mxu0 0.0
  %185 = vmatpush1.msra.mxu0 0.0
  %186 = vmatprep.subr.mxu0 0.0
  %187 = vmatpush1.msra.mxu0 0.0
  %188 = vmatprep.subr.mxu0 0.0
  %189 = vmatpush1.msra.mxu0 0.0
  %190 = vmatprep.subr.mxu0 0.0
  %191 = vmatpush1.msra.mxu0 0.0
  %192 = vmatprep.subr.mxu0 0.0
  %193 = vmatpush1.msra.mxu0 0.0
  %194 = vmatprep.subr.mxu0 0.0
  %195 = vmatpush1.msra.mxu0 0.0
  %196 = vmatprep.subr.mxu0 0.0
  %197 = vmatpush1.msra.mxu0 0.0
  %198 = vmatprep.subr.mxu0 0.0
  %199 = vmatpush1.msra.mxu0 0.0
  %200 = vmatprep.subr.mxu0 0.0
  %201 = vmatpush1.msra.mxu0 0.0
  %202 = vmatprep.subr.mxu0 0.0
  %203 = vmatpush1.msra.mxu0 0.0
  %204 = vmatprep.subr.mxu0 0.0
  %205 = vmatpush1.msra.mxu0 0.0
  %206 = vmatprep.subr.mxu0 0.0
  %207 = vmatpush1.msra.mxu0 0.0
  %208 = vmatprep.subr.mxu0 0.0
  %209 = vmatpush1.msra.mxu0 0.0
  %210 = vmatprep.mubr.f32.mxu0 0.0
  %211 = vmatmul.mubr.f32.gmra.mrb[0].mxu0 %v144
  %v212 = vpop.f32.mrb[0].mxu0
  %v213 = vadd.f32 %v140, %v212
  %v214 = vpop.f32.mrb[0].mxu0
  %215 = vdwg.mxu0
  %v216 = vmax.f32 %v213, 0.0
  %v217 = vld [vmem:[%s7] sm:$0xff]
  %v218 = vld [vmem:[%s7 + $0x8] sm:$0xff]
  %v219 = vld [vmem:[%s7 + $0x10] sm:$0xff]
  %v220 = vld [vmem:[%s7 + $0x18] sm:$0xff]
  %v221 = vld [vmem:[%s8] sm:$0x1]
  %v223 = vlaneseq
  %v224 = vshrl.u32 %v223, 7
  %v225 = vsub.s32 0, %v224
  %v226 = vrot.slane %v221, %v225
  %v229 = vsel %vm142, %v216, 0
  %231 = vmatprep.subr.mxu0 0.0
  %232 = vmatpush1.msra.mxu0 %v217
  %233 = vmatprep.subr.mxu0 0.0
  %234 = vmatpush1.msra.mxu0 %v218
  %235 = vmatprep.subr.mxu0 0.0
  %236 = vmatpush1.msra.mxu0 %v219
  %237 = vmatprep.subr.mxu0 0.0
  %238 = vmatpush1.msra.mxu0 %v220
  %239 = vmatprep.subr.mxu0 0.0
  %240 = vmatpush1.msra.mxu0 0.0
  %241 = vmatprep.subr.mxu0 0.0
  %242 = vmatpush1.msra.mxu0 0.0
  %243 = vmatprep.subr.mxu0 0.0
  %244 = vmatpush1.msra.mxu0 0.0
  %245 = vmatprep.subr.mxu0 0.0
  %246 = vmatpush1.msra.mxu0 0.0
  %247 = vmatprep.subr.mxu0 0.0
  %248 = vmatpush1.msra.mxu0 0.0
  %249 = vmatprep.subr.mxu0 0.0
  %250 = vmatpush1.msra.mxu0 0.0
  %251 = vmatprep.subr.mxu0 0.0
  %252 = vmatpush1.msra.mxu0 0.0
  %253 = vmatprep.subr.mxu0 0.0
  %254 = vmatpush1.msra.mxu0 0.0
  %255 = vmatprep.subr.mxu0 0.0
  %256 = vmatpush1.msra.mxu0 0.0
  %257 = vmatprep.subr.mxu0 0.0
  %258 = vmatpush1.msra.mxu0 0.0
  %259 = vmatprep.subr.mxu0 0.0
  %260 = vmatpush1.msra.mxu0 0.0
  %261 = vmatprep.subr.mxu0 0.0
  %262 = vmatpush1.msra.mxu0 0.0
  %263 = vmatprep.subr.mxu0 0.0
  %264 = vmatpush1.msra.mxu0 0.0
  %265 = vmatprep.subr.mxu0 0.0
  %266 = vmatpush1.msra.mxu0 0.0
  %267 = vmatprep.subr.mxu0 0.0
  %268 = vmatpush1.msra.mxu0 0.0
  %269 = vmatprep.subr.mxu0 0.0
  %270 = vmatpush1.msra.mxu0 0.0
  %271 = vmatprep.subr.mxu0 0.0
  %272 = vmatpush1.msra.mxu0 0.0
  %273 = vmatprep.subr.mxu0 0.0
  %274 = vmatpush1.msra.mxu0 0.0
  %275 = vmatprep.subr.mxu0 0.0
  %276 = vmatpush1.msra.mxu0 0.0
  %277 = vmatprep.subr.mxu0 0.0
  %278 = vmatpush1.msra.mxu0 0.0
  %279 = vmatprep.subr.mxu0 0.0
  %280 = vmatpush1.msra.mxu0 0.0
  %281 = vmatprep.subr.mxu0 0.0
  %282 = vmatpush1.msra.mxu0 0.0
  %283 = vmatprep.subr.mxu0 0.0
  %284 = vmatpush1.msra.mxu0 0.0
  %285 = vmatprep.subr.mxu0 0.0
  %286 = vmatpush1.msra.mxu0 0.0
  %287 = vmatprep.subr.mxu0 0.0
  %288 = vmatpush1.msra.mxu0 0.0
  %289 = vmatprep.subr.mxu0 0.0
  %290 = vmatpush1.msra.mxu0 0.0
  %291 = vmatprep.subr.mxu0 0.0
  %292 = vmatpush1.msra.mxu0 0.0
  %293 = vmatprep.subr.mxu0 0.0
  %294 = vmatpush1.msra.mxu0 0.0
  %295 = vmatprep.mubr.f32.mxu0 0.0
  %296 = vmatmul.mubr.f32.gmra.mrb[0].mxu0 %v229
  %v297 = vpop.f32.mrb[0].mxu0
  %v298 = vadd.f32 %v226, %v297
  %v299 = vpop.f32.mrb[0].mxu0
  %300 = vdwg.mxu0
  %v301 = vlaneseq
  %v302 = vand.u32 %v301, 127
  %vm303 = vcmp.lt.s32.totalorder %v302, 8
  %v304 = vtanh.pop %v298
  %v305 = vsel %vm303, %v304, %v298
  %vm306 = vcmask 72704
  %307 = vst.msk [vmem:[%s9] sm:$0xff] %vm306, %v305
  // Predicated region
  $region38: #{_dynamics_forward_impl.1} parent=0 // pred_check
    _
  $region39: #{_dynamics_forward_impl.1} parent=0 // pred_check_branch
    %309 = sbr.rel (0) target = $region41
  $region40: #{_dynamics_forward_impl.1} parent=0 // pred_region
    _
  $region41: #{_dynamics_forward_impl.1} parent=0 // pred_fallthru
    _
  // Predicated region
  $region42: #{_dynamics_forward_impl.1} parent=0 // pred_check
    _
  $region43: #{_dynamics_forward_impl.1} parent=0 // pred_check_branch
    %311 = sbr.rel (0) target = $region45
  $region44: #{_dynamics_forward_impl.1} parent=0 // pred_region
    _
  $region45: #{_dynamics_forward_impl.1} parent=0 // pred_fallthru
    _

</llo_original>
